<compile_context>
chip_gen: v7x
topology: tpu7x:2x2x1
jax: 0.10.0
libtpu: 0.0.40
codegen_flags: <defaults>
</compile_context>

<pallas_src>
import jax
import jax.numpy as jnp
from jax.experimental import pallas as pl
from jax.experimental.pallas import tpu as pltpu


def _round_up(v, m):
    return (v + m - 1) // m * m


def _a_tile_budget_bytes():
    """VMEM byte budget for the double-buffered adjacency row tile."""
    try:
        cap = pltpu.get_tpu_info().vmem_capacity_bytes
    except Exception:
        cap = 64 << 20  # conservative fallback: v7x has 64 MiB physical per TC
    # Leave room for the resident H block, the output double-buffer and
    # compiler scratch; stay under the smallest default scoped-VMEM limits.
    return min(24 << 20, cap // 3)


def _pick_tile_m(n_pad, a_itemsize):
    """Largest node-tile tm (multiple of 32, divides n_pad, <= 512) that fits
    the VMEM budget and still leaves >= 4 row blocks (>= 2 per v7x core)."""
    budget = _a_tile_budget_bytes()
    fallback = 32
    have_fallback = False
    for tm in range(min(512, n_pad), 31, -32):
        if n_pad % tm:
            continue
        if 2 * tm * n_pad * a_itemsize > budget:   # double-buffered A tile
            continue
        if not have_fallback:
            fallback, have_fallback = tm, True
        if n_pad // tm >= 4:
            return tm
    # TODO(synk): if even tm=32 blows the budget (n_pad in the 100K+ range on
    # v7x), add a K (contraction) grid axis with an f32 accumulator scratch,
    # pl.when init/finalize and dimension_semantics=("parallel", "arbitrary").
    return fallback


# ---------------------------------------------------------------------------
# Pallas kernel: out_tile = row_scale_tile * ((A+I)_tile @ H_scaled) + b_cat
# ---------------------------------------------------------------------------
def _gcn_propagate_kernel(a_ref, h_ref, rs_ref, b_ref, o_ref):
    # The adjacency tile may be stored compressed (bf16 today; int8 / fp8 in
    # the future) -- widen to bf16 for the MXU.  Any dequant scale is folded
    # into rs_ref by the wrapper, so this body never changes.
    a = a_ref[...].astype(jnp.bfloat16)
    acc = jnp.dot(a, h_ref[...], preferred_element_type=jnp.float32)  # MXU, f32 acc
    # Epilogue in f32 (v5e VPU has no bf16): left D^-1/2 row scale + bias.
    o_ref[...] = (acc * rs_ref[...] + b_ref[...]).astype(o_ref.dtype)


def gcn_propagate(adj_pad, h_pad, row_scale, bias):
    """out = diag(row_scale) @ (adj_pad @ h_pad) + bias   (all padded to n_pad)."""
    n_pad = adj_pad.shape[0]
    f2 = h_pad.shape[1]
    a_item = jnp.dtype(adj_pad.dtype).itemsize
    h_item = jnp.dtype(h_pad.dtype).itemsize

    tm = _pick_tile_m(n_pad, a_item)
    grid = (n_pad // tm,)

    # Explicit scoped-VMEM limit sized from the double-buffered working set
    # (headroom on v7x's 64 MiB while v5e/v6e run the same configuration).
    work = (2 * tm * n_pad * a_item            # A row tile, double-buffered
            + 2 * n_pad * f2 * h_item          # resident H
            + 2 * tm * f2 * 4                  # output tile (f32)
            + 2 * tm * 4 + 2 * f2 * 4)         # row scale + bias
    vmem_limit = min(48 << 20, max(32 << 20, int(1.5 * work) + (2 << 20)))

    cost = pl.CostEstimate(
        flops=2 * n_pad * n_pad * f2,
        transcendentals=0,
        bytes_accessed=n_pad * n_pad * a_item + n_pad * f2 * (h_item + 4),
    )

    # TODO(synk): for realistic sparse graphs replace the dense adjacency
    # stream with a block-sparse tile list via scalar prefetch
    # (PrefetchScalarGridSpec, num_scalar_prefetch >= 1) so all-zero row
    # tiles are never DMA'd (O(E) traffic instead of O(N^2)).
    # TODO(synk): pipeline_mode=pl.Buffered(1) on the resident H / rs / bias
    # specs (and Buffered(3) on the A spec) once extra VMEM headroom is needed.
    return pl.pallas_call(
        _gcn_propagate_kernel,
        out_shape=jax.ShapeDtypeStruct((n_pad, f2), jnp.float32),
        grid_spec=pltpu.PrefetchScalarGridSpec(
            num_scalar_prefetch=0,
            grid=grid,
            in_specs=[
                pl.BlockSpec((tm, n_pad), lambda i: (i, 0)),   # (A+I) row tile
                pl.BlockSpec((n_pad, f2), lambda i: (0, 0)),   # H_scaled (resident)
                pl.BlockSpec((tm, 1), lambda i: (i, 0)),       # row scale tile
                pl.BlockSpec((1, f2), lambda i: (0, 0)),       # bias (resident)
            ],
            out_specs=pl.BlockSpec((tm, f2), lambda i: (i, 0)),
        ),
        compiler_params=pltpu.CompilerParams(
            dimension_semantics=("parallel",),
            vmem_limit_bytes=vmem_limit,
        ),
        cost_estimate=cost,
    )(adj_pad, h_pad, row_scale, bias)


# ---------------------------------------------------------------------------
# Parameter init (glorot-uniform weights, zero biases — PyG GCNConv defaults).
# ---------------------------------------------------------------------------
def _glorot(key, fan_in, fan_out):
    limit = jnp.sqrt(6.0 / (fan_in + fan_out))
    return jax.random.uniform(
        key, (fan_in, fan_out), jnp.float32, minval=-limit, maxval=limit)


def init_variational_linear_encoder(key, in_channels, out_channels):
    k_mu, k_ls = jax.random.split(key)
    return {
        "conv_mu": {"w": _glorot(k_mu, in_channels, out_channels),
                    "b": jnp.zeros((out_channels,), jnp.float32)},
        "conv_logstd": {"w": _glorot(k_ls, in_channels, out_channels),
                        "b": jnp.zeros((out_channels,), jnp.float32)},
    }


# ---------------------------------------------------------------------------
# Forward pass, mirroring VariationalLinearEncoder.forward:
#   return (conv_mu(x, edge_index, edge_weight), conv_logstd(x, edge_index, edge_weight))
# ---------------------------------------------------------------------------
def variational_linear_encoder_forward(params, x, edge_index, edge_weight=None):
    n = x.shape[0]
    f_out = params["conv_mu"]["w"].shape[1]
    n_pad = max(128, _round_up(n, 128))

    src, dst = edge_index[0], edge_index[1]
    if edge_weight is None:
        ew = jnp.ones(src.shape[0], jnp.float32)
    else:
        ew = edge_weight.astype(jnp.float32)

    # (A + I) built ONCE, padded, directly in bf16 (single O(N^2) pass — no
    # dense f32 A_hat, no separate pad / cast passes).  Duplicate edges sum,
    # matching PyG's scatter-add message-passing semantics.
    # TODO(synk): store this operand as int8 (v5e/v6e) or fp8-e4m3 (v7x) and
    # fold the dequant scale into `row_scale` below; the kernel is unchanged.
    adj = jnp.zeros((n_pad, n_pad), jnp.bfloat16)
    adj = adj.at[dst, src].add(ew.astype(jnp.bfloat16))
    diag = jnp.arange(n)
    adj = adj.at[diag, diag].add(jnp.ones((n,), jnp.bfloat16))   # self loops

    # Degrees straight from the edge list (O(E); no dense row-sum pass):
    # deg_i = 1 (self loop) + sum of incoming edge weights.
    deg = jnp.ones((n,), jnp.float32).at[dst].add(ew)
    dinv = jnp.where(deg > 0, jax.lax.rsqrt(deg), 0.0)

    # Fuse the two heads along the output dim; hoist H = X @ W_cat out of the
    # kernel and pre-apply the right-hand D^-1/2.
    w_cat = jnp.concatenate(
        [params["conv_mu"]["w"], params["conv_logstd"]["w"]], axis=1)
    b_cat = jnp.concatenate(
        [params["conv_mu"]["b"], params["conv_logstd"]["b"]], axis=0)
    f2 = w_cat.shape[1]

    h = (x.astype(jnp.float32) @ w_cat) * dinv[:, None]
    h_pad = jnp.zeros((n_pad, f2), jnp.bfloat16).at[:n, :].set(
        h.astype(jnp.bfloat16))

    # Left-hand D^-1/2 as a per-row epilogue scale.  Padded rows get scale 0,
    # so they carry only the bias — they are sliced off below and must never
    # be consumed from the padded buffer.
    row_scale = jnp.zeros((n_pad, 1), jnp.float32).at[:n, 0].set(dinv)
    bias = b_cat.reshape(1, f2).astype(jnp.float32)

    out = gcn_propagate(adj, h_pad, row_scale, bias)[:n]
    return out[:, :f_out], out[:, f_out:]


# ---------------------------------------------------------------------------
# Pure-JAX f32 reference (dense PyG GCNConv semantics) for validation.
# ---------------------------------------------------------------------------
def _reference_forward(params, x, edge_index, edge_weight=None):
    n = x.shape[0]
    src, dst = edge_index[0], edge_index[1]
    ew = (jnp.ones(src.shape[0], jnp.float32) if edge_weight is None
          else edge_weight.astype(jnp.float32))
    a = jnp.zeros((n, n), jnp.float32).at[dst, src].add(ew)
    a = a + jnp.eye(n, dtype=jnp.float32)
    deg = a.sum(axis=1)
    dinv = jnp.where(deg > 0, jax.lax.rsqrt(deg), 0.0)
    a_hat = a * dinv[:, None] * dinv[None, :]
    xf = x.astype(jnp.float32)
    mu = a_hat @ (xf @ params["conv_mu"]["w"]) + params["conv_mu"]["b"]
    ls = a_hat @ (xf @ params["conv_logstd"]["w"]) + params["conv_logstd"]["b"]
    return mu, ls


# ---------------------------------------------------------------------------
# Demo
# ---------------------------------------------------------------------------
if __name__ == "__main__":
    key = jax.random.PRNGKey(0)
    k_x, k_e, k_w, k_p = jax.random.split(key, 4)

    num_nodes = 200        # deliberately not a multiple of 128: exercises padding
    in_channels = 32
    out_channels = 16
    num_edges = 800

    x = jax.random.normal(k_x, (num_nodes, in_channels), jnp.float32)
    edge_index = jax.random.randint(k_e, (2, num_edges), 0, num_nodes, jnp.int32)
    edge_weight = jax.random.uniform(k_w, (num_edges,), jnp.float32, 0.5, 1.5)

    params = init_variational_linear_encoder(k_p, in_channels, out_channels)

    def run_and_check(ew):
        mu, logstd = variational_linear_encoder_forward(params, x, edge_index, ew)
        jax.block_until_ready((mu, logstd))
        assert mu.shape == (num_nodes, out_channels)
        assert logstd.shape == (num_nodes, out_channels)
        assert mu.dtype == jnp.float32 and logstd.dtype == jnp.float32
        mu_ref, ls_ref = _reference_forward(params, x, edge_index, ew)
        for got, ref in ((mu, mu_ref), (logstd, ls_ref)):
            err = float(jnp.max(jnp.abs(got - ref)))
            # Relative-style tolerance (bf16 operands, f32 MXU accumulation).
            tol = 2e-2 * float(jnp.max(jnp.abs(ref))) + 2e-2
            assert err < tol, (err, tol)

    run_and_check(None)          # default unit edge weights (GCNConv default)
    run_and_check(edge_weight)   # explicit edge_weight path

    print("KERNEL_OK")
</pallas_src>

<mosaic_0001>
module attributes {stable_mosaic.version = 11 : i64} {
  func.func @_gcn_propagate_kernel(%arg0: i32, %arg1: memref<64x256xbf16, #tpu.memory_space<vmem>>, %arg2: memref<256x32xbf16, #tpu.memory_space<vmem>>, %arg3: memref<64x1xf32, #tpu.memory_space<vmem>>, %arg4: memref<1x32xf32, #tpu.memory_space<vmem>>, %arg5: memref<64x32xf32, #tpu.memory_space<vmem>>) attributes {dimension_semantics = [#tpu.dimension_semantics<parallel>], iteration_bounds = array<i64: 4>, scalar_prefetch = 0 : i64, scratch_operands = 0 : i64, tpu.core_type = #tpu.core_type<tc>, window_params = [{transform_indices = @transform_0, window_bounds = array<i64: 64, 256>}, {pipeline_mode = #tpu.pipeline_mode<synchronous>, transform_indices = @transform_1, window_bounds = array<i64: 256, 32>}, {transform_indices = @transform_2, window_bounds = array<i64: 64, 1>}, {pipeline_mode = #tpu.pipeline_mode<synchronous>, transform_indices = @transform_3, window_bounds = array<i64: 1, 32>}, {transform_indices = @transform_4, window_bounds = array<i64: 64, 32>}]} {
    %c0 = arith.constant 0 : index
    %c0_0 = arith.constant 0 : index
    %0 = vector.load %arg1[%c0, %c0_0] : memref<64x256xbf16, #tpu.memory_space<vmem>>, vector<64x256xbf16>
    %c0_1 = arith.constant 0 : index
    %c0_2 = arith.constant 0 : index
    %1 = vector.load %arg2[%c0_1, %c0_2] : memref<256x32xbf16, #tpu.memory_space<vmem>>, vector<256x32xbf16>
    %cst = arith.constant dense<0.000000e+00> : vector<64x32xf32>
    %2 = tpu.matmul %0, %1, %cst {dimension_numbers = #tpu.dot_dimension_numbers<[1], [0], [0], [1], [0, 0, 1, 1], [], []>} : vector<64x256xbf16>, vector<256x32xbf16>, vector<64x32xf32> -> vector<64x32xf32>
    %c0_3 = arith.constant 0 : index
    %c0_4 = arith.constant 0 : index
    %3 = vector.load %arg3[%c0_3, %c0_4] : memref<64x1xf32, #tpu.memory_space<vmem>>, vector<64x1xf32>
    %4 = vector.broadcast %3 : vector<64x1xf32> to vector<64x32xf32>
    %5 = arith.mulf %2, %4 : vector<64x32xf32>
    %c0_5 = arith.constant 0 : index
    %c0_6 = arith.constant 0 : index
    %6 = vector.load %arg4[%c0_5, %c0_6] : memref<1x32xf32, #tpu.memory_space<vmem>>, vector<1x32xf32>
    %7 = vector.broadcast %6 : vector<1x32xf32> to vector<64x32xf32>
    %8 = arith.addf %5, %7 : vector<64x32xf32>
    %c0_7 = arith.constant 0 : index
    %c0_8 = arith.constant 0 : index
    %9 = vector.load %arg5[%c0_7, %c0_8] : memref<64x32xf32, #tpu.memory_space<vmem>>, vector<64x32xf32>
    tpu.vector_store %arg5[%c0_7, %c0_8], %8 {strides = array<i32>} : memref<64x32xf32, #tpu.memory_space<vmem>>, vector<64x32xf32>,
    return
  }
  func.func @transform_0(%arg0: i32) -> (i32, i32) {
    %c0_i32 = arith.constant 0 : i32
    %c0_i32_0 = arith.constant 0 : i32
    return %arg0, %c0_i32 : i32, i32
  }
  func.func @transform_1(%arg0: i32) -> (i32, i32) {
    %c0_i32 = arith.constant 0 : i32
    %c0_i32_0 = arith.constant 0 : i32
    %c0_i32_1 = arith.constant 0 : i32
    return %c0_i32, %c0_i32_0 : i32, i32
  }
  func.func @transform_2(%arg0: i32) -> (i32, i32) {
    %c0_i32 = arith.constant 0 : i32
    %c0_i32_0 = arith.constant 0 : i32
    return %arg0, %c0_i32 : i32, i32
  }
  func.func @transform_3(%arg0: i32) -> (i32, i32) {
    %c0_i32 = arith.constant 0 : i32
    %c0_i32_0 = arith.constant 0 : i32
    %c0_i32_1 = arith.constant 0 : i32
    return %c0_i32, %c0_i32_0 : i32, i32
  }
  func.func @transform_4(%arg0: i32) -> (i32, i32) {
    %c0_i32 = arith.constant 0 : i32
    %c0_i32_0 = arith.constant 0 : i32
    return %arg0, %c0_i32 : i32, i32
  }
}

</mosaic_0001>

<llo_original>
// kernel: tpu_custom_call.1
$region0: #{tpu_custom_call.1}
  #allocation0 [shape = 'u32[]', space=smem, size = 0x4, offset = 0x4, fixed_abs, tag = 'smem constant byte address 0x4 - core index']
  #allocation1 [shape = 'u32[144,128]{1,0:T(1,128)}', space=vmem, size = 0x12000, scoped, tag = 'internal scratch']
  %s0 = inlined_call_operand.vmem [shape: bf16[256,256], index: 0, kind: input, shape index: {}]
  %s1 = inlined_call_operand.vmem [shape: bf16[256,32], index: 1, kind: input, shape index: {}]
  %s2 = inlined_call_operand.vmem [shape: f32[256,1], index: 2, kind: input, shape index: {}]
  %s3 = inlined_call_operand.vmem [shape: f32[1,32], index: 3, kind: input, shape index: {}]
  %s4 = inlined_call_operand.vmem [shape: f32[256,32], index: 4, kind: output, shape index: {}]
  %s5 = sld [smem:[#allocation0]]
  $region49: #{tpu_custom_call.1} parent=0
    _
  %s7 = ssub.s32 1, %s5
  %s8 = scalar_select 0, %s7, %s5
  loop: start=0, step=1, limit=6
  $region2: #{tpu_custom_call.1} parent=0 // loop_pre_header
    _
  $region3: #{tpu_custom_call.1} parent=0 // loop_header
    %s10 = sphi 0, %s14
    %p11 = scmp.ge.s32.totalorder %s10, 6
    %s20 = sphi 0, %s22
    %s23 = sphi 0, %s20
    %s24 = sphi 0, %s23
    %s40 = sphi 0, %s24
    %s44 = sphi 0, %s44
    %s46 = sphi 0, %s44
    %s47 = sphi 0, %s46
    %s61 = sphi 0, %s47
    %s67 = sphi 0, %s69
    %s70 = sphi 0, %s67
    %s71 = sphi 0, %s70
    %s87 = sphi 0, %s71
    %s91 = sphi 0, %s91
    %s93 = sphi 0, %s91
    %s94 = sphi 0, %s93
    %s108 = sphi 0, %s94
    %s114 = sphi 0, %s116
    %s117 = sphi 0, %s114
    %s118 = sphi 0, %s117
    %s134 = sphi 0, %s118
  $region4: #{tpu_custom_call.1} parent=0 // loop_header_branch
    %13 = sbr.rel (%p11) target = $region8
  $region5: #{tpu_custom_call.1} parent=0 // loop_body
    %s15 = ssub.s32 %s10, 1
    %s16 = ssub.s32 %s10, 2
    %s17 = sadd.s32 %s10, 1
    %s18 = ssub.s32 %s10, %s17
    %p19 = scmp.eq.s32.totalorder %s18, 0
    %s21 = sadd.s32 %s20, 1
    %s22 = scalar_select %p19, %s20, %s21
    %p25 = pneg %p19
    %p26 = scmp.eq.s32.totalorder %s10, 3
    %p27 = por %p25, %p26
    %p28 = scmp.ne.s32.totalorder %s20, %s23
    %p29 = scmp.eq.s32.totalorder %s10, 0
    %p30 = por %p28, %p29
    %p31 = scmp.ne.s32.totalorder %s20, %s23
    %p32 = scmp.eq.s32.totalorder %s15, 3
    %p33 = por %p31, %p32
    %p34 = scmp.ne.s32.totalorder %s23, %s24
    %p35 = scmp.eq.s32.totalorder %s15, 0
    %p36 = por %p34, %p35
    %p37 = scmp.ne.s32.totalorder %s23, %s24
    %p38 = scmp.eq.s32.totalorder %s16, 3
    %p39 = por %p37, %p38
    %p41 = scmp.ne.s32.totalorder %s24, %s40
    %p42 = scmp.eq.s32.totalorder %s16, 0
    %p43 = por %p41, %p42
    %s45 = sadd.s32 %s44, 1
    %p48 = scmp.eq.s32.totalorder %s10, 3
    %p49 = scmp.ne.s32.totalorder %s44, %s46
    %p50 = scmp.eq.s32.totalorder %s10, 0
    %p51 = por %p49, %p50
    %p52 = scmp.ne.s32.totalorder %s44, %s46
    %p53 = scmp.eq.s32.totalorder %s15, 3
    %p54 = por %p52, %p53
    %p55 = scmp.ne.s32.totalorder %s46, %s47
    %p56 = scmp.eq.s32.totalorder %s15, 0
    %p57 = por %p55, %p56
    %p58 = scmp.ne.s32.totalorder %s46, %s47
    %p59 = scmp.eq.s32.totalorder %s16, 3
    %p60 = por %p58, %p59
    %p62 = scmp.ne.s32.totalorder %s47, %s61
    %p63 = scmp.eq.s32.totalorder %s16, 0
    %p64 = por %p62, %p63
    %s65 = ssub.s32 %s10, %s17
    %p66 = scmp.eq.s32.totalorder %s65, 0
    %s68 = sadd.s32 %s67, 1
    %s69 = scalar_select %p66, %s67, %s68
    %p72 = pneg %p66
    %p73 = scmp.eq.s32.totalorder %s10, 3
    %p74 = por %p72, %p73
    %p75 = scmp.ne.s32.totalorder %s67, %s70
    %p76 = scmp.eq.s32.totalorder %s10, 0
    %p77 = por %p75, %p76
    %p78 = scmp.ne.s32.totalorder %s67, %s70
    %p79 = scmp.eq.s32.totalorder %s15, 3
    %p80 = por %p78, %p79
    %p81 = scmp.ne.s32.totalorder %s70, %s71
    %p82 = scmp.eq.s32.totalorder %s15, 0
    %p83 = por %p81, %p82
    %p84 = scmp.ne.s32.totalorder %s70, %s71
    %p85 = scmp.eq.s32.totalorder %s16, 3
    %p86 = por %p84, %p85
    %p88 = scmp.ne.s32.totalorder %s71, %s87
    %p89 = scmp.eq.s32.totalorder %s16, 0
    %p90 = por %p88, %p89
    %s92 = sadd.s32 %s91, 1
    %p95 = scmp.eq.s32.totalorder %s10, 3
    %p96 = scmp.ne.s32.totalorder %s91, %s93
    %p97 = scmp.eq.s32.totalorder %s10, 0
    %p98 = por %p96, %p97
    %p99 = scmp.ne.s32.totalorder %s91, %s93
    %p100 = scmp.eq.s32.totalorder %s15, 3
    %p101 = por %p99, %p100
    %p102 = scmp.ne.s32.totalorder %s93, %s94
    %p103 = scmp.eq.s32.totalorder %s15, 0
    %p104 = por %p102, %p103
    %p105 = scmp.ne.s32.totalorder %s93, %s94
    %p106 = scmp.eq.s32.totalorder %s16, 3
    %p107 = por %p105, %p106
    %p109 = scmp.ne.s32.totalorder %s94, %s108
    %p110 = scmp.eq.s32.totalorder %s16, 0
    %p111 = por %p109, %p110
    %s112 = ssub.s32 %s10, %s17
    %p113 = scmp.eq.s32.totalorder %s112, 0
    %s115 = sadd.s32 %s114, 1
    %s116 = scalar_select %p113, %s114, %s115
    %p119 = pneg %p113
    %p120 = scmp.eq.s32.totalorder %s10, 3
    %p121 = por %p119, %p120
    %p122 = scmp.ne.s32.totalorder %s114, %s117
    %p123 = scmp.eq.s32.totalorder %s10, 0
    %p124 = por %p122, %p123
    %p125 = scmp.ne.s32.totalorder %s114, %s117
    %p126 = scmp.eq.s32.totalorder %s15, 3
    %p127 = por %p125, %p126
    %p128 = scmp.ne.s32.totalorder %s117, %s118
    %p129 = scmp.eq.s32.totalorder %s15, 0
    %p130 = por %p128, %p129
    %p131 = scmp.ne.s32.totalorder %s117, %s118
    %p132 = scmp.eq.s32.totalorder %s16, 3
    %p133 = por %p131, %p132
    %p135 = scmp.ne.s32.totalorder %s118, %s134
    %p136 = scmp.eq.s32.totalorder %s16, 0
    %p137 = por %p135, %p136
    %p138 = scmp.le.s32.totalorder 1, %s10
    %p139 = scmp.lt.s32.totalorder %s10, 5
    %p140 = pnand %p138, %p139
    %p141 = pneg %p140
    // Predicated region
    $region9: #{tpu_custom_call.1} parent=5 // pred_check
      _
    $region10: #{tpu_custom_call.1} parent=5 // pred_check_branch
      %143 = sbr.rel (%p140) target = $region12
    $region11: #{tpu_custom_call.1} parent=5 // pred_region
      %s144 = ssub.s32 %s10, 1
      // Predicated region
      $region13: #{tpu_custom_call.1} parent=11 // pred_check
        %p145 = pneg %p57
      $region14: #{tpu_custom_call.1} parent=11 // pred_check_branch
        %147 = sbr.rel (%p145) target = $region16
      $region15: #{tpu_custom_call.1} parent=11 // pred_region
        _
      $region16: #{tpu_custom_call.1} parent=11 // pred_fallthru
        _
      // Predicated region
      $region17: #{tpu_custom_call.1} parent=11 // pred_check
        %p148 = pneg %p104
      $region18: #{tpu_custom_call.1} parent=11 // pred_check_branch
        %150 = sbr.rel (%p148) target = $region20
      $region19: #{tpu_custom_call.1} parent=11 // pred_region
        _
      $region20: #{tpu_custom_call.1} parent=11 // pred_fallthru
        _
    $region12: #{tpu_custom_call.1} parent=5 // pred_fallthru
      _
    %p151 = scmp.lt.s32.totalorder %s10, 4
    // Predicated region
    $region21: #{tpu_custom_call.1} parent=5 // pred_check
      %p152 = pneg %p151
    $region22: #{tpu_custom_call.1} parent=5 // pred_check_branch
      %154 = sbr.rel (%p152) target = $region24
    $region23: #{tpu_custom_call.1} parent=5 // pred_region
      // Predicated region
      $region25: #{tpu_custom_call.1} parent=23 // pred_check
        %p155 = pneg %p30
      $region26: #{tpu_custom_call.1} parent=23 // pred_check_branch
        %157 = sbr.rel (%p155) target = $region28
      $region27: #{tpu_custom_call.1} parent=23 // pred_region
        %s158 = smul.u32 8, %s10
        %p159 = scmp.lt.s32.totalorder %s158, 31
        %s160 = scalar_select %p159, %s158, 31
        %s161 = smul.addr %s160, 2
        %s162 = smul.addr %s161, 4
        %s163 = scalar_lea.vmem %s0, %s162
        %s164 = smul.u32 8, %s10
      $region28: #{tpu_custom_call.1} parent=23 // pred_fallthru
        _
      // Predicated region
      $region29: #{tpu_custom_call.1} parent=23 // pred_check
        %p165 = pneg %p77
      $region30: #{tpu_custom_call.1} parent=23 // pred_check_branch
        %167 = sbr.rel (%p165) target = $region32
      $region31: #{tpu_custom_call.1} parent=23 // pred_region
        %s168 = smul.u32 8, %s10
        %p169 = scmp.lt.s32.totalorder %s168, 31
        %s170 = scalar_select %p169, %s168, 31
        %s171 = smul.addr %s170, 8
        %s172 = scalar_lea.vmem %s2, %s171
        %s173 = smul.u32 8, %s10
      $region32: #{tpu_custom_call.1} parent=23 // pred_fallthru
        _
    $region24: #{tpu_custom_call.1} parent=5 // pred_fallthru
      _
    %p174 = scmp.le.s32.totalorder 1, %s10
    %p175 = scmp.lt.s32.totalorder %s10, 5
    %p176 = pnand %p174, %p175
    %p177 = pneg %p176
    // Predicated region
    $region33: #{tpu_custom_call.1} parent=5 // pred_check
      _
    $region34: #{tpu_custom_call.1} parent=5 // pred_check_branch
      %179 = sbr.rel (%p176) target = $region36
    $region35: #{tpu_custom_call.1} parent=5 // pred_region
      %s180 = ssub.s32 %s10, 1
      %s181 = smul.u32 8, %s15
      %p182 = scmp.lt.s32.totalorder %s181, 31
      %s183 = scalar_select %p182, %s181, 31
      %s184 = smul.addr %s183, 2
      %s185 = smul.addr %s184, 4
      %s186 = scalar_lea.vmem %s0, %s185
      %p187 = pneg %p36
      %p188 = pneg %p33
      %p189 = pneg %p57
      %p190 = pneg %p54
      %s191 = smul.u32 8, %s15
      %p192 = scmp.lt.s32.totalorder %s191, 31
      %s193 = scalar_select %p192, %s191, 31
      %s194 = smul.addr %s193, 8
      %s195 = scalar_lea.vmem %s2, %s194
      %p196 = pneg %p83
      %p197 = pneg %p80
      %p198 = pneg %p104
      %p199 = pneg %p101
      %p200 = pneg %p130
      %p201 = pneg %p127
      %s202 = smul.u32 8, %s15
      %p203 = scmp.lt.s32.totalorder %s202, 31
      %s204 = scalar_select %p203, %s202, 31
      %s205 = smul.addr %s204, 8
      %s206 = scalar_lea.vmem %s4, %s205
      %s207 = smul.u32 8, %s15
      %p208 = scmp.lt.s32.totalorder %s207, 31
      %s209 = scalar_select %p208, %s207, 31
      %s210 = smul.addr %s209, 2
      %s211 = smul.addr %s210, 4
      %s212 = scalar_lea.vmem %s0, %s211
      %s213 = smul.u32 8, %s15
      %s214 = smul.u32 8, %s15
      %p215 = scmp.lt.s32.totalorder %s214, 31
      %s216 = scalar_select %p215, %s214, 31
      %s217 = smul.addr %s216, 8
      %s218 = scalar_lea.vmem %s2, %s217
      %s219 = smul.u32 8, %s15
      %s220 = smul.u32 8, %s15
      %p221 = scmp.lt.s32.totalorder %s220, 31
      %s222 = scalar_select %p221, %s220, 31
      %s223 = smul.addr %s222, 8
      %s224 = scalar_lea.vmem %s4, %s223
      %s225 = smul.u32 8, %s15
      %v227 = vld [vmem:[%s212] sm:$0xff]
      %v228 = vld [vmem:[%s212 + $0x8] sm:$0xff]
      %v229 = vld [vmem:[%s212 + $0x10] sm:$0xff]
      %v230 = vld [vmem:[%s212 + $0x18] sm:$0xff]
      %v231 = vld [vmem:[%s212 + $0x20] sm:$0xff]
      %v232 = vld [vmem:[%s212 + $0x28] sm:$0xff]
      %v233 = vld [vmem:[%s212 + $0x30] sm:$0xff]
      %v234 = vld [vmem:[%s212 + $0x38] sm:$0xff]
      %v235 = vld [vmem:[%s1] sm:$0xf]
      %v236 = vld [vmem:[%s1 + $0x4] sm:$0xf]
      %v237 = vld [vmem:[%s1 + $0x8] sm:$0xf]
      %v238 = vld [vmem:[%s1 + $0xc] sm:$0xf]
      %v239 = vld [vmem:[%s1 + $0x10] sm:$0xf]
      %v240 = vld [vmem:[%s1 + $0x14] sm:$0xf]
      %v241 = vld [vmem:[%s1 + $0x18] sm:$0xf]
      %v242 = vld [vmem:[%s1 + $0x1c] sm:$0xf]
      %v243 = vld [vmem:[%s1 + $0x20] sm:$0xf]
      %v244 = vld [vmem:[%s1 + $0x24] sm:$0xf]
      %v245 = vld [vmem:[%s1 + $0x28] sm:$0xf]
      %v246 = vld [vmem:[%s1 + $0x2c] sm:$0xf]
      %v247 = vld [vmem:[%s1 + $0x30] sm:$0xf]
      %v248 = vld [vmem:[%s1 + $0x34] sm:$0xf]
      %v249 = vld [vmem:[%s1 + $0x38] sm:$0xf]
      %v250 = vld [vmem:[%s1 + $0x3c] sm:$0xf]
      %v251 = vld [vmem:[%s1 + $0x40] sm:$0xf]
      %v252 = vld [vmem:[%s1 + $0x44] sm:$0xf]
      %v253 = vld [vmem:[%s1 + $0x48] sm:$0xf]
      %v254 = vld [vmem:[%s1 + $0x4c] sm:$0xf]
      %v255 = vld [vmem:[%s1 + $0x50] sm:$0xf]
      %v256 = vld [vmem:[%s1 + $0x54] sm:$0xf]
      %v257 = vld [vmem:[%s1 + $0x58] sm:$0xf]
      %v258 = vld [vmem:[%s1 + $0x5c] sm:$0xf]
      %v259 = vld [vmem:[%s1 + $0x60] sm:$0xf]
      %v260 = vld [vmem:[%s1 + $0x64] sm:$0xf]
      %v261 = vld [vmem:[%s1 + $0x68] sm:$0xf]
      %v262 = vld [vmem:[%s1 + $0x6c] sm:$0xf]
      %v263 = vld [vmem:[%s1 + $0x70] sm:$0xf]
      %v264 = vld [vmem:[%s1 + $0x74] sm:$0xf]
      %v265 = vld [vmem:[%s1 + $0x78] sm:$0xf]
      %v266 = vld [vmem:[%s1 + $0x7c] sm:$0xf]
      %v275 = vunpack.c.l.b16 %v227
      %v276 = vunpack.c.h.b16 %v227
      %v277 = vunpack.c.l.b16 %v228
      %v278 = vunpack.c.h.b16 %v228
      %v279 = vunpack.c.l.b16 %v229
      %v280 = vunpack.c.h.b16 %v229
      %v281 = vunpack.c.l.b16 %v230
      %v282 = vunpack.c.h.b16 %v230
      %v283 = vunpack.c.l.b16 %v231
      %v284 = vunpack.c.h.b16 %v231
      %v285 = vunpack.c.l.b16 %v232
      %v286 = vunpack.c.h.b16 %v232
      %v287 = vunpack.c.l.b16 %v233
      %v288 = vunpack.c.h.b16 %v233
      %v289 = vunpack.c.l.b16 %v234
      %v290 = vunpack.c.h.b16 %v234
      %v291 = vpack.c.b16 %v277, %v275
      %v292 = vpack.c.b16 %v278, %v276
      %v293 = vpack.c.b16 %v281, %v279
      %v294 = vpack.c.b16 %v282, %v280
      %v295 = vpack.c.b16 %v285, %v283
      %v296 = vpack.c.b16 %v286, %v284
      %v297 = vpack.c.b16 %v289, %v287
      %v298 = vpack.c.b16 %v290, %v288
      %v339 = vunpack.c.l.b16 %v235
      %v340 = vunpack.c.l.b16 %v236
      %v341 = vunpack.c.l.b16 %v237
      %v342 = vunpack.c.l.b16 %v238
      %v343 = vunpack.c.l.b16 %v239
      %v344 = vunpack.c.l.b16 %v240
      %v345 = vunpack.c.l.b16 %v241
      %v346 = vunpack.c.l.b16 %v242
      %v347 = vunpack.c.l.b16 %v243
      %v348 = vunpack.c.l.b16 %v244
      %v349 = vunpack.c.l.b16 %v245
      %v350 = vunpack.c.l.b16 %v246
      %v351 = vunpack.c.l.b16 %v247
      %v352 = vunpack.c.l.b16 %v248
      %v353 = vunpack.c.l.b16 %v249
      %v354 = vunpack.c.l.b16 %v250
      %v355 = vunpack.c.l.b16 %v251
      %v356 = vunpack.c.l.b16 %v252
      %v357 = vunpack.c.l.b16 %v253
      %v358 = vunpack.c.l.b16 %v254
      %v359 = vunpack.c.l.b16 %v255
      %v360 = vunpack.c.l.b16 %v256
      %v361 = vunpack.c.l.b16 %v257
      %v362 = vunpack.c.l.b16 %v258
      %v363 = vunpack.c.l.b16 %v259
      %v364 = vunpack.c.l.b16 %v260
      %v365 = vunpack.c.l.b16 %v261
      %v366 = vunpack.c.l.b16 %v262
      %v367 = vunpack.c.l.b16 %v263
      %v368 = vunpack.c.l.b16 %v264
      %v369 = vunpack.c.l.b16 %v265
      %v370 = vunpack.c.l.b16 %v266
      %v371 = vpack.c.b16 %v340, %v339
      %v372 = vpack.c.b16 %v342, %v341
      %v373 = vpack.c.b16 %v344, %v343
      %v374 = vpack.c.b16 %v346, %v345
      %v375 = vpack.c.b16 %v348, %v347
      %v376 = vpack.c.b16 %v350, %v349
      %v377 = vpack.c.b16 %v352, %v351
      %v378 = vpack.c.b16 %v354, %v353
      %v379 = vpack.c.b16 %v356, %v355
      %v380 = vpack.c.b16 %v358, %v357
      %v381 = vpack.c.b16 %v360, %v359
      %v382 = vpack.c.b16 %v362, %v361
      %v383 = vpack.c.b16 %v364, %v363
      %v384 = vpack.c.b16 %v366, %v365
      %v385 = vpack.c.b16 %v368, %v367
      %v386 = vpack.c.b16 %v370, %v369
      %403 = vmatprep.subr.bf16.mxu0 0
      %404 = vmatpush1.bf16.msra.mxu0 %v371
      %405 = vmatprep.subr.bf16.mxu0 0
      %406 = vmatpush1.bf16.msra.mxu0 %v372
      %407 = vmatprep.subr.bf16.mxu0 0
      %408 = vmatpush1.bf16.msra.mxu0 %v373
      %409 = vmatprep.subr.bf16.mxu0 0
      %410 = vmatpush1.bf16.msra.mxu0 %v374
      %411 = vmatprep.subr.bf16.mxu0 0
      %412 = vmatpush1.bf16.msra.mxu0 %v375
      %413 = vmatprep.subr.bf16.mxu0 0
      %414 = vmatpush1.bf16.msra.mxu0 %v376
      %415 = vmatprep.subr.bf16.mxu0 0
      %416 = vmatpush1.bf16.msra.mxu0 %v377
      %417 = vmatprep.subr.bf16.mxu0 0
      %418 = vmatpush1.bf16.msra.mxu0 %v378
      %419 = vmatprep.subr.bf16.mxu0 0
      %420 = vmatpush1.bf16.msra.mxu0 %v379
      %421 = vmatprep.subr.bf16.mxu0 0
      %422 = vmatpush1.bf16.msra.mxu0 %v380
      %423 = vmatprep.subr.bf16.mxu0 0
      %424 = vmatpush1.bf16.msra.mxu0 %v381
      %425 = vmatprep.subr.bf16.mxu0 0
      %426 = vmatpush1.bf16.msra.mxu0 %v382
      %427 = vmatprep.subr.bf16.mxu0 0
      %428 = vmatpush1.bf16.msra.mxu0 %v383
      %429 = vmatprep.subr.bf16.mxu0 0
      %430 = vmatpush1.bf16.msra.mxu0 %v384
      %431 = vmatprep.subr.bf16.mxu0 0
      %432 = vmatpush1.bf16.msra.mxu0 %v385
      %433 = vmatprep.subr.bf16.mxu0 0
      %434 = vmatpush1.bf16.msra.mxu0 %v386
      %435 = vmatprep.mubr.bf16.mxu0 %v292
      %436 = vmatmul.mubr.bf16.gmra.mrb[0].mxu0 %v291
      %v437 = vpop.f32.mrb[0].mxu0
      %v438 = vadd.f32 0.0, %v437
      %v439 = vpop.f32.mrb[0].mxu0
      %v440 = vpop.f32.mrb[0].mxu0
      %v441 = vadd.f32 0.0, %v440
      %v442 = vpop.f32.mrb[0].mxu0
      %443 = vmatprep.mubr.bf16.mxu0 %v294
      %444 = vmatmul.mubr.bf16.gmra.mrb[0].mxu0 %v293
      %v445 = vpop.f32.mrb[0].mxu0
      %v446 = vadd.f32 0.0, %v445
      %v447 = vpop.f32.mrb[0].mxu0
      %v448 = vpop.f32.mrb[0].mxu0
      %v449 = vadd.f32 0.0, %v448
      %v450 = vpop.f32.mrb[0].mxu0
      %451 = vmatprep.mubr.bf16.mxu0 %v296
      %452 = vmatmul.mubr.bf16.gmra.mrb[0].mxu0 %v295
      %v453 = vpop.f32.mrb[0].mxu0
      %v454 = vadd.f32 0.0, %v453
      %v455 = vpop.f32.mrb[0].mxu0
      %v456 = vpop.f32.mrb[0].mxu0
      %v457 = vadd.f32 0.0, %v456
      %v458 = vpop.f32.mrb[0].mxu0
      %459 = vmatprep.mubr.bf16.mxu0 %v298
      %460 = vmatmul.mubr.bf16.gmra.mrb[0].mxu0 %v297
      %v461 = vpop.f32.mrb[0].mxu0
      %v462 = vadd.f32 0.0, %v461
      %v463 = vpop.f32.mrb[0].mxu0
      %v464 = vpop.f32.mrb[0].mxu0
      %v465 = vadd.f32 0.0, %v464
      %v466 = vpop.f32.mrb[0].mxu0
      %467 = vdwg.mxu0
      %v468 = vld [vmem:[%s218] sm:$0xff]
      %v469 = vld [vmem:[%s218 + $0x8] sm:$0xff]
      %v470 = vld [vmem:[%s218 + $0x10] sm:$0xff]
      %v471 = vld [vmem:[%s218 + $0x18] sm:$0xff]
      %v472 = vld [vmem:[%s218 + $0x20] sm:$0xff]
      %v473 = vld [vmem:[%s218 + $0x28] sm:$0xff]
      %v474 = vld [vmem:[%s218 + $0x30] sm:$0xff]
      %v475 = vld [vmem:[%s218 + $0x38] sm:$0xff]
      %477 = vset.pattern.permute.xlu0 0
      %478 = vperm.xlu0 %477, %v468
      %v479 = vpop.permute.xlu0 %478
      %482 = vset.pattern.permute.xlu0 0
      %483 = vperm.xlu0 %482, %v469
      %v484 = vpop.permute.xlu0 %483
      %487 = vset.pattern.permute.xlu0 0
      %488 = vperm.xlu0 %487, %v470
      %v489 = vpop.permute.xlu0 %488
      %492 = vset.pattern.permute.xlu0 0
      %493 = vperm.xlu0 %492, %v471
      %v494 = vpop.permute.xlu0 %493
      %497 = vset.pattern.permute.xlu0 0
      %498 = vperm.xlu0 %497, %v472
      %v499 = vpop.permute.xlu0 %498
      %502 = vset.pattern.permute.xlu0 0
      %503 = vperm.xlu0 %502, %v473
      %v504 = vpop.permute.xlu0 %503
      %507 = vset.pattern.permute.xlu0 0
      %508 = vperm.xlu0 %507, %v474
      %v509 = vpop.permute.xlu0 %508
      %512 = vset.pattern.permute.xlu0 0
      %513 = vperm.xlu0 %512, %v475
      %v514 = vpop.permute.xlu0 %513
      %v516 = vmul.f32 %v438, %v479
      %v517 = vmul.f32 %v441, %v484
      %v518 = vmul.f32 %v446, %v489
      %v519 = vmul.f32 %v449, %v494
      %v520 = vmul.f32 %v454, %v499
      %v521 = vmul.f32 %v457, %v504
      %v522 = vmul.f32 %v462, %v509
      %v523 = vmul.f32 %v465, %v514
      %v524 = vld [vmem:[%s3] sm:$0x1]
      %v526 = vlaneseq
      %v527 = vshrl.u32 %v526, 7
      %v528 = vsub.s32 0, %v527
      %v529 = vrot.slane %v524, %v528
      %v531 = vadd.f32 %v516, %v529
      %v532 = vadd.f32 %v517, %v529
      %v533 = vadd.f32 %v518, %v529
      %v534 = vadd.f32 %v519, %v529
      %v535 = vadd.f32 %v520, %v529
      %v536 = vadd.f32 %v521, %v529
      %v537 = vadd.f32 %v522, %v529
      %v538 = vadd.f32 %v523, %v529
      %vm539 = vcmask 261120
      %540 = vst.msk [vmem:[%s224] sm:$0xff] %vm539, %v531
      %541 = vst.msk [vmem:[%s224 + $0x8] sm:$0xff] %vm539, %v532
      %542 = vst.msk [vmem:[%s224 + $0x10] sm:$0xff] %vm539, %v533
      %543 = vst.msk [vmem:[%s224 + $0x18] sm:$0xff] %vm539, %v534
      %544 = vst.msk [vmem:[%s224 + $0x20] sm:$0xff] %vm539, %v535
      %545 = vst.msk [vmem:[%s224 + $0x28] sm:$0xff] %vm539, %v536
      %546 = vst.msk [vmem:[%s224 + $0x30] sm:$0xff] %vm539, %v537
      %547 = vst.msk [vmem:[%s224 + $0x38] sm:$0xff] %vm539, %v538
      %s548 = smul.u32 8, %s15
      %p549 = scmp.lt.s32.totalorder %s548, 31
      %s550 = scalar_select %p549, %s548, 31
      %s551 = smul.addr %s550, 8
      %s552 = scalar_lea.vmem %s4, %s551
      // Predicated region
      $region37: #{tpu_custom_call.1} parent=35 // pred_check
        %p553 = pneg %p127
      $region38: #{tpu_custom_call.1} parent=35 // pred_check_branch
        %555 = sbr.rel (%p553) target = $region40
      $region39: #{tpu_custom_call.1} parent=35 // pred_region
        %s556 = smul.u32 8, %s15
      $region40: #{tpu_custom_call.1} parent=35 // pred_fallthru
        _
    $region36: #{tpu_custom_call.1} parent=5 // pred_fallthru
      _
    %p557 = scmp.le.s32.totalorder 2, %s10
    // Predicated region
    $region41: #{tpu_custom_call.1} parent=5 // pred_check
      %p558 = pneg %p557
    $region42: #{tpu_custom_call.1} parent=5 // pred_check_branch
      %560 = sbr.rel (%p558) target = $region44
    $region43: #{tpu_custom_call.1} parent=5 // pred_region
      %s561 = ssub.s32 %s10, 2
      // Predicated region
      $region45: #{tpu_custom_call.1} parent=43 // pred_check
        %p562 = pneg %p133
      $region46: #{tpu_custom_call.1} parent=43 // pred_check_branch
        %564 = sbr.rel (%p562) target = $region48
      $region47: #{tpu_custom_call.1} parent=43 // pred_region
        %s565 = smul.u32 8, %s16
        %p566 = scmp.lt.s32.totalorder %s565, 31
        %s567 = scalar_select %p566, %s565, 31
        %s568 = smul.addr %s567, 8
        %s569 = scalar_lea.vmem %s4, %s568
      $region48: #{tpu_custom_call.1} parent=43 // pred_fallthru
        _
    $region44: #{tpu_custom_call.1} parent=5 // pred_fallthru
      _
  $region6: #{tpu_custom_call.1} parent=0 // loop_footer
    %s14 = sadd.s32 1, %s10
  $region7: #{tpu_custom_call.1} parent=0 // loop_footer_branch
    %9 = sbr.rel target = $region3
  $region8: #{tpu_custom_call.1} parent=0 // loop_exit
    _

</llo_original>
